<compile_context>
chip_gen: v5e
topology: v5e:2x2
jax: 0.10.0
libtpu: 0.0.40
codegen_flags: <defaults>
</compile_context>

<pallas_src>
import math
import numpy as np

import jax
import jax.numpy as jnp
from jax.experimental import pallas as pl
from jax.experimental.pallas import tpu as pltpu


# ---------------------------------------------------------------------------
# Kernel: one (TX, Y, C) output tile = emb_x tile (TX, C) + emb_y table (Y, C)
# ---------------------------------------------------------------------------
def _penc_kernel(ex_ref, ey_ref, o_ref):
    ex = ex_ref[...]                       # (TX, C) float32
    ey = ey_ref[...]                       # (Y,  C) float32
    val = ex[:, None, :] + ey[None, :, :]  # (TX, Y, C) — pure broadcast-add
    o_ref[...] = val.astype(o_ref.dtype)


def _get_emb_np(sin_inp):
    """numpy port of get_emb: sin/cos interleaved along the last dim."""
    emb = np.stack((np.sin(sin_inp), np.cos(sin_inp)), axis=-1)
    return emb.reshape(sin_inp.shape[0], -1)


def _build_tables(X, Y, orig_ch, N):
    """Per-axis additive tables: out[x, y, c] = ex_full[x, c] + ey_full[y, c]."""
    channels = int(math.ceil(orig_ch / 4) * 2)
    inv_freq = 1.0 / (
        N ** (np.arange(0, channels, 2, dtype=np.float32) / np.float32(channels))
    )  # (channels // 2,)

    pos_x = np.arange(X, dtype=np.float32)
    pos_y = np.arange(Y, dtype=np.float32)
    emb_x = _get_emb_np(pos_x[:, None] * inv_freq[None, :])  # (X, channels)
    emb_y = _get_emb_np(pos_y[:, None] * inv_freq[None, :])  # (Y, channels)

    ex_full = np.zeros((X, orig_ch), dtype=np.float32)
    ey_full = np.zeros((Y, orig_ch), dtype=np.float32)
    nx = min(orig_ch, channels)                 # x-half channels kept after truncation
    ex_full[:, :nx] = emb_x[:, :nx]
    if orig_ch > channels:                      # y-half channels kept after truncation
        ey_full[:, channels:orig_ch] = emb_y[:, : orig_ch - channels]
    return ex_full, ey_full


def _choose_tile_x(X, Y, C, elt_bytes, target_bytes=4 * 1024 * 1024):
    """Largest TX dividing X with TX % 8 == 0 (or TX == X) within the byte budget."""
    candidates = [t for t in range(8, X + 1, 8) if X % t == 0]
    candidates.append(X)  # full extent is always layout-legal
    fitting = [t for t in candidates if t * Y * C * elt_bytes <= target_bytes]
    if fitting:
        return max(fitting)
    return min(candidates)


def positional_encoding_2d(tensor, N=10000.0):
    """Pallas equivalent of PositionalEncoding2D(channels=tensor.shape[-1])(tensor)."""
    if tensor.ndim != 4:
        raise RuntimeError("The input tensor has to be 4d!")
    B, X, Y, orig_ch = tensor.shape

    ex_full, ey_full = _build_tables(X, Y, orig_ch, N)
    ex_full = jnp.asarray(ex_full)   # (X, C) float32
    ey_full = jnp.asarray(ey_full)   # (Y, C) float32

    elt_bytes = jnp.dtype(tensor.dtype).itemsize
    TX = _choose_tile_x(X, Y, orig_ch, elt_bytes)
    grid = (X // TX,)

    penc = pl.pallas_call(
        _penc_kernel,
        out_shape=jax.ShapeDtypeStruct((X, Y, orig_ch), tensor.dtype),
        grid=grid,
        in_specs=[
            pl.BlockSpec((TX, orig_ch), lambda i: (i, 0)),   # emb_x tile
            pl.BlockSpec((Y, orig_ch), lambda i: (0, 0)),    # emb_y (resident)
        ],
        out_specs=pl.BlockSpec((TX, Y, orig_ch), lambda i: (i, 0, 0)),
        compiler_params=pltpu.CompilerParams(
            dimension_semantics=("parallel",),
            vmem_limit_bytes=32 * 1024 * 1024,
        ),
    )(ex_full, ey_full)

    # Batch-invariant result: broadcast instead of recomputing / rewriting B times.
    return jnp.broadcast_to(penc[None], (B, X, Y, orig_ch))


# ---------------------------------------------------------------------------
# Pure numpy port of the PyTorch forward, for verification.
# ---------------------------------------------------------------------------
def _reference_numpy(tensor_shape, N=10000.0):
    B, X, Y, orig_ch = tensor_shape
    channels = int(math.ceil(orig_ch / 4) * 2)
    inv_freq = 1.0 / (
        N ** (np.arange(0, channels, 2, dtype=np.float32) / float(channels))
    )
    pos_x = np.arange(X, dtype=np.float32)
    pos_y = np.arange(Y, dtype=np.float32)
    sin_inp_x = np.einsum("i,j->ij", pos_x, inv_freq)
    sin_inp_y = np.einsum("i,j->ij", pos_y, inv_freq)

    def get_emb(sin_inp):
        emb = np.stack((np.sin(sin_inp), np.cos(sin_inp)), axis=-1)
        return emb.reshape(*emb.shape[:-2], -1)

    emb_x = get_emb(sin_inp_x)[:, None, :]          # (X, 1, channels)
    emb_y = get_emb(sin_inp_y)                      # (Y, channels)
    emb = np.zeros((X, Y, channels * 2), dtype=np.float32)
    emb[:, :, :channels] = emb_x
    emb[:, :, channels:2 * channels] = emb_y
    return np.broadcast_to(emb[None, :, :, :orig_ch], (B, X, Y, orig_ch)).copy()


if __name__ == "__main__":
    # TODO(synk): PyTorch `cached_penc` buffer is host-side memoization state;
    # caching is omitted here (recompute each call), numerics are identical.
    key = jax.random.PRNGKey(0)

    # Main case (matches module convention: batch=2, x=8, y=16, ch=4).
    x = jax.random.normal(key, (2, 8, 16, 4), dtype=jnp.float32)
    out = jax.block_until_ready(positional_encoding_2d(x))
    ref = _reference_numpy(x.shape)
    assert out.shape == x.shape and out.dtype == x.dtype
    np.testing.assert_allclose(np.asarray(out), ref, rtol=1e-5, atol=1e-5)

    # Second small case exercising X-tiling and channel truncation (orig_ch=6).
    x2 = jax.random.normal(key, (1, 32, 16, 6), dtype=jnp.float32)
    out2 = jax.block_until_ready(positional_encoding_2d(x2))
    ref2 = _reference_numpy(x2.shape)
    assert out2.shape == x2.shape and out2.dtype == x2.dtype
    np.testing.assert_allclose(np.asarray(out2), ref2, rtol=1e-5, atol=1e-5)

    print("KERNEL_OK")
</pallas_src>

<mosaic_0001>
module attributes {stable_mosaic.version = 11 : i64} {
  func.func @_penc_kernel(%arg0: i32, %arg1: memref<8x4xf32, #tpu.memory_space<vmem>>, %arg2: memref<16x4xf32, #tpu.memory_space<vmem>>, %arg3: memref<8x16x4xf32, #tpu.memory_space<vmem>>) attributes {dimension_semantics = [#tpu.dimension_semantics<parallel>], iteration_bounds = array<i64: 1>, scalar_prefetch = 0 : i64, scratch_operands = 0 : i64, tpu.core_type = #tpu.core_type<tc>, window_params = [{transform_indices = @transform_0, window_bounds = array<i64: 8, 4>}, {pipeline_mode = #tpu.pipeline_mode<synchronous>, transform_indices = @transform_1, window_bounds = array<i64: 16, 4>}, {transform_indices = @transform_2, window_bounds = array<i64: 8, 16, 4>}]} {
    %c0 = arith.constant 0 : index
    %c0_0 = arith.constant 0 : index
    %0 = vector.load %arg1[%c0, %c0_0] : memref<8x4xf32, #tpu.memory_space<vmem>>, vector<8x4xf32>
    %c0_1 = arith.constant 0 : index
    %c0_2 = arith.constant 0 : index
    %1 = vector.load %arg2[%c0_1, %c0_2] : memref<16x4xf32, #tpu.memory_space<vmem>>, vector<16x4xf32>
    %2 = vector.shape_cast %0 : vector<8x4xf32> to vector<8x1x4xf32>
    %3 = vector.shape_cast %1 : vector<16x4xf32> to vector<1x16x4xf32>
    %4 = vector.broadcast %2 : vector<8x1x4xf32> to vector<8x16x4xf32>
    %5 = vector.broadcast %3 : vector<1x16x4xf32> to vector<8x16x4xf32>
    %6 = arith.addf %4, %5 : vector<8x16x4xf32>
    %c0_3 = arith.constant 0 : index
    %c0_4 = arith.constant 0 : index
    %c0_5 = arith.constant 0 : index
    %7 = vector.load %arg3[%c0_3, %c0_4, %c0_5] : memref<8x16x4xf32, #tpu.memory_space<vmem>>, vector<8x16x4xf32>
    tpu.vector_store %arg3[%c0_3, %c0_4, %c0_5], %6 {strides = array<i32>} : memref<8x16x4xf32, #tpu.memory_space<vmem>>, vector<8x16x4xf32>,
    return
  }
  func.func @transform_0(%arg0: i32) -> (i32, i32) {
    %c0_i32 = arith.constant 0 : i32
    %c0_i32_0 = arith.constant 0 : i32
    return %arg0, %c0_i32 : i32, i32
  }
  func.func @transform_1(%arg0: i32) -> (i32, i32) {
    %c0_i32 = arith.constant 0 : i32
    %c0_i32_0 = arith.constant 0 : i32
    %c0_i32_1 = arith.constant 0 : i32
    return %c0_i32, %c0_i32_0 : i32, i32
  }
  func.func @transform_2(%arg0: i32) -> (i32, i32, i32) {
    %c0_i32 = arith.constant 0 : i32
    %c0_i32_0 = arith.constant 0 : i32
    %c0_i32_1 = arith.constant 0 : i32
    return %arg0, %c0_i32, %c0_i32_0 : i32, i32, i32
  }
}

</mosaic_0001>

<llo_original>
// kernel: tpu_custom_call.1
$region0: #{tpu_custom_call.1}
  #allocation0 [shape = 'u32[]', space=smem, size = 0x4, offset = 0x4, fixed_abs, tag = 'smem constant byte address 0x4 - core index']
  #allocation1 [shape = 'u32[72,128]{1,0:T(1,128)}', space=vmem, size = 0x9000, scoped, tag = 'internal scratch']
  %s0 = inlined_call_operand.vmem [shape: f32[8,4], index: 0, kind: input, shape index: {}]
  %s1 = inlined_call_operand.vmem [shape: f32[16,4], index: 1, kind: input, shape index: {}]
  %s2 = inlined_call_operand.vmem [shape: f32[8,16,4], index: 2, kind: output, shape index: {}]
  %s3 = sld [smem:[#allocation0]]
  $region18: #{tpu_custom_call.1} parent=0
    _
  %s5 = ssub.s32 1, %s3
  %s6 = scalar_select 0, %s5, %s3
  // Predicated region
  $region2: #{tpu_custom_call.1} parent=0 // pred_check
    _
  $region3: #{tpu_custom_call.1} parent=0 // pred_check_branch
    %8 = sbr.rel (0) target = $region5
  $region4: #{tpu_custom_call.1} parent=0 // pred_region
    _
  $region5: #{tpu_custom_call.1} parent=0 // pred_fallthru
    _
  // Predicated region
  $region6: #{tpu_custom_call.1} parent=0 // pred_check
    _
  $region7: #{tpu_custom_call.1} parent=0 // pred_check_branch
    %10 = sbr.rel (0) target = $region9
  $region8: #{tpu_custom_call.1} parent=0 // pred_region
    _
  $region9: #{tpu_custom_call.1} parent=0 // pred_fallthru
    _
  %v11 = vld [vmem:[%s0] sm:$0xff]
  %v12 = vld [vmem:[%s1] sm:$0xff]
  %v13 = vld [vmem:[%s1 + $0x8] sm:$0xff]
  %v15 = vrot.slane %v11, 1
  %v16 = vrot.slane %v11, 2
  %v17 = vrot.slane %v11, 3
  %v18 = vrot.slane %v11, 4
  %v19 = vrot.slane %v11, 5
  %v20 = vrot.slane %v11, 6
  %v21 = vrot.slane %v11, 7
  %v22 = vperm.slane %v11, 0
  %v23 = vperm.slane %v15, 0
  %v24 = vperm.slane %v16, 0
  %v25 = vperm.slane %v17, 0
  %v26 = vperm.slane %v18, 0
  %v27 = vperm.slane %v19, 0
  %v28 = vperm.slane %v20, 0
  %v29 = vperm.slane %v21, 0
  %v38 = vadd.f32 %v22, %v12
  %v39 = vadd.f32 %v22, %v13
  %v40 = vadd.f32 %v23, %v12
  %v41 = vadd.f32 %v23, %v13
  %v42 = vadd.f32 %v24, %v12
  %v43 = vadd.f32 %v24, %v13
  %v44 = vadd.f32 %v25, %v12
  %v45 = vadd.f32 %v25, %v13
  %v46 = vadd.f32 %v26, %v12
  %v47 = vadd.f32 %v26, %v13
  %v48 = vadd.f32 %v27, %v12
  %v49 = vadd.f32 %v27, %v13
  %v50 = vadd.f32 %v28, %v12
  %v51 = vadd.f32 %v28, %v13
  %v52 = vadd.f32 %v29, %v12
  %v53 = vadd.f32 %v29, %v13
  %vm54 = vcmask 31744
  %55 = vst.msk [vmem:[%s2] sm:$0xff] %vm54, %v38
  %56 = vst.msk [vmem:[%s2 + $0x8] sm:$0xff] %vm54, %v39
  %57 = vst.msk [vmem:[%s2 + $0x10] sm:$0xff] %vm54, %v40
  %58 = vst.msk [vmem:[%s2 + $0x18] sm:$0xff] %vm54, %v41
  %59 = vst.msk [vmem:[%s2 + $0x20] sm:$0xff] %vm54, %v42
  %60 = vst.msk [vmem:[%s2 + $0x28] sm:$0xff] %vm54, %v43
  %61 = vst.msk [vmem:[%s2 + $0x30] sm:$0xff] %vm54, %v44
  %62 = vst.msk [vmem:[%s2 + $0x38] sm:$0xff] %vm54, %v45
  %63 = vst.msk [vmem:[%s2 + $0x40] sm:$0xff] %vm54, %v46
  %64 = vst.msk [vmem:[%s2 + $0x48] sm:$0xff] %vm54, %v47
  %65 = vst.msk [vmem:[%s2 + $0x50] sm:$0xff] %vm54, %v48
  %66 = vst.msk [vmem:[%s2 + $0x58] sm:$0xff] %vm54, %v49
  %67 = vst.msk [vmem:[%s2 + $0x60] sm:$0xff] %vm54, %v50
  %68 = vst.msk [vmem:[%s2 + $0x68] sm:$0xff] %vm54, %v51
  %69 = vst.msk [vmem:[%s2 + $0x70] sm:$0xff] %vm54, %v52
  %70 = vst.msk [vmem:[%s2 + $0x78] sm:$0xff] %vm54, %v53
  // Predicated region
  $region10: #{tpu_custom_call.1} parent=0 // pred_check
    _
  $region11: #{tpu_custom_call.1} parent=0 // pred_check_branch
    %72 = sbr.rel (0) target = $region13
  $region12: #{tpu_custom_call.1} parent=0 // pred_region
    _
  $region13: #{tpu_custom_call.1} parent=0 // pred_fallthru
    _
  // Predicated region
  $region14: #{tpu_custom_call.1} parent=0 // pred_check
    _
  $region15: #{tpu_custom_call.1} parent=0 // pred_check_branch
    %74 = sbr.rel (0) target = $region17
  $region16: #{tpu_custom_call.1} parent=0 // pred_region
    _
  $region17: #{tpu_custom_call.1} parent=0 // pred_fallthru
    _

</llo_original>
